<compile_context>
chip_gen: v7x
topology: tpu7x:2x2x1
jax: 0.10.0
libtpu: 0.0.40
codegen_flags: <defaults>
</compile_context>

<pallas_src>
import functools
import math

import numpy as np

import jax
import jax.numpy as jnp
from jax.experimental import pallas as pl
from jax.experimental.pallas import tpu as pltpu


# ----------------------------------------------------------------------------
# helpers
# ----------------------------------------------------------------------------
def _pick(dim, candidates):
    """Largest candidate tile that exactly divides `dim`; else the full dim
    (full-dim blocks are always legal)."""
    for c in candidates:
        if dim % c == 0:
            return c
    return dim


# ----------------------------------------------------------------------------
# fused linear kernel:  out = [res + ls *] act( LN?(x) @ w + b )
#   x, w, res in bf16;  accumulator / LN / epilogue math in f32;  out bf16.
# ----------------------------------------------------------------------------
def _fused_linear_kernel(*refs, activation, fuse_ln, fuse_res, eps, nk):
    it = iter(refs)
    x_ref = next(it)
    w_ref = next(it)
    b_ref = next(it)
    ln_g_ref = next(it) if fuse_ln else None
    ln_b_ref = next(it) if fuse_ln else None
    res_ref = next(it) if fuse_res else None
    ls_ref = next(it) if fuse_res else None
    o_ref = next(it)
    acc_ref = next(it)

    k = pl.program_id(2)

    @pl.when(k == 0)
    def _():
        acc_ref[...] = jnp.zeros_like(acc_ref)

    x = x_ref[...]                       # bf16, straight off the DMA
    if fuse_ln:                          # LayerNorm prologue (full K in block)
        xf = x.astype(jnp.float32)
        mu = jnp.mean(xf, axis=-1, keepdims=True)
        xc = xf - mu
        var = jnp.mean(xc * xc, axis=-1, keepdims=True)
        x = (xc * jax.lax.rsqrt(var + eps) * ln_g_ref[...]
             + ln_b_ref[...]).astype(jnp.bfloat16)

    # bf16 MXU operands (no in-kernel weight cast), f32 accumulation
    acc_ref[...] += jnp.dot(x, w_ref[...], preferred_element_type=jnp.float32)

    @pl.when(k == nk - 1)
    def _():
        y = acc_ref[...] + b_ref[...]
        if activation == "relu":
            y = jnp.maximum(y, 0.0)
        elif activation == "gelu":
            y = jax.nn.gelu(y, approximate=True)
        if fuse_res:
            y = res_ref[...].astype(jnp.float32) + y * ls_ref[...]
        o_ref[...] = y.astype(o_ref.dtype)


def fused_linear(x, w, b=None, *, ln_g=None, ln_b=None, activation=None,
                 residual=None, ls=None, out_dtype=jnp.bfloat16):
    """y = [residual + ls *] act( LN?(x) @ w + b ),  x:(M,K) bf16, w:(K,N) bf16."""
    M, K = x.shape
    N = w.shape[1]
    if b is None:
        b = jnp.zeros((N,), jnp.float32)
    fuse_ln = ln_g is not None
    fuse_res = residual is not None

    # tall M tiles amortize the per-i weight re-stream at real scale
    tm = _pick(M, (512, 256, 128, 64, 32, 16))
    tn = _pick(N, (512, 256, 128))
    tk = K if fuse_ln else _pick(K, (512, 256, 128))
    gm, gn, gk = M // tm, N // tn, K // tk

    inputs = [x, w, b.reshape(1, N).astype(jnp.float32)]
    in_specs = [
        pl.BlockSpec((tm, tk), lambda i, j, k: (i, k)),
        pl.BlockSpec((tk, tn), lambda i, j, k: (k, j)),
        pl.BlockSpec((1, tn), lambda i, j, k: (0, j)),
    ]
    if fuse_ln:
        inputs += [ln_g.reshape(1, K), ln_b.reshape(1, K)]
        in_specs += [pl.BlockSpec((1, tk), lambda i, j, k: (0, k))] * 2
    if fuse_res:
        inputs += [residual, ls.reshape(1, N)]
        in_specs += [pl.BlockSpec((tm, tn), lambda i, j, k: (i, j)),
                     pl.BlockSpec((1, tn), lambda i, j, k: (0, j))]

    return pl.pallas_call(
        functools.partial(_fused_linear_kernel, activation=activation,
                          fuse_ln=fuse_ln, fuse_res=fuse_res, eps=1e-6, nk=gk),
        grid=(gm, gn, gk),
        in_specs=in_specs,
        out_specs=pl.BlockSpec((tm, tn), lambda i, j, k: (i, j)),
        out_shape=jax.ShapeDtypeStruct((M, N), out_dtype),
        scratch_shapes=[pltpu.VMEM((tm, tn), jnp.float32)],
        compiler_params=pltpu.CompilerParams(
            dimension_semantics=("parallel", "parallel", "arbitrary"),
            vmem_limit_bytes=64 * 1024 * 1024),
    )(*inputs)


# ----------------------------------------------------------------------------
# fused multi-head attention + output projection + LayerScale + residual
#   qkv passed fused (three BlockSpecs on the last axis); bf16 in / bf16 out.
# ----------------------------------------------------------------------------
def _attn_proj_kernel(q_ref, k_ref, v_ref, res_ref, wp_ref, pb_ref, ls_ref,
                      o_ref, *, num_heads, dh, scale, n_valid):
    q = q_ref[0]                          # (tq, D) bf16
    k = k_ref[0]                          # (N,  D) bf16
    v = v_ref[0]                          # (N,  D) bf16
    tq, D = q.shape
    N = k.shape[0]

    lane = jax.lax.broadcasted_iota(jnp.int32, (1, D), 1)
    key_ok = jax.lax.broadcasted_iota(jnp.int32, (1, N), 1) < n_valid

    def head_body(h, ctx):
        lo = h * dh
        msk = jnp.logical_and(lane >= lo, lane < lo + dh)           # (1, D)
        # single masked temporary: mask K for the scores, mask p@V columns
        # for the per-head context (column j of p@V only depends on V[:, j]).
        kh = jnp.where(msk, k, jnp.zeros_like(k))
        s = jax.lax.dot_general(q, kh, (((1,), (1,)), ((), ())),
                                preferred_element_type=jnp.float32) * scale
        s = jnp.where(key_ok, s, -1e30)                  # mask padded keys
        s = s - jnp.max(s, axis=-1, keepdims=True)
        e = jnp.exp(s)
        p = e * pl.reciprocal(jnp.sum(e, axis=-1, keepdims=True), approx=True)
        pv = jnp.dot(p.astype(jnp.bfloat16), v, preferred_element_type=jnp.float32)
        return ctx + jnp.where(msk, pv, 0.0)

    ctx = jax.lax.fori_loop(0, num_heads, head_body,
                            jnp.zeros((tq, D), jnp.float32), unroll=True)

    y = jnp.dot(ctx.astype(jnp.bfloat16), wp_ref[...],
                preferred_element_type=jnp.float32) + pb_ref[...]
    y = res_ref[0].astype(jnp.float32) + y * ls_ref[...]
    o_ref[0] = y.astype(o_ref.dtype)      # single lane-dense store


def attention_proj(qkv, x_res, w_proj, b_proj, ls, *, num_heads, scale, n_valid):
    """qkv: (B, N, 3D) bf16 fused buffer; x_res: (B, N, D) bf16 residual."""
    B, N, D3 = qkv.shape
    D = D3 // 3
    tq = _pick(N, (256, 128, 64, 32, 16))      # query-tile axis (v7x dual-TC)
    nq = N // tq

    q_spec = pl.BlockSpec((1, tq, D), lambda b, qi: (b, qi, 0))
    k_spec = pl.BlockSpec((1, N, D), lambda b, qi: (b, 0, 1))
    v_spec = pl.BlockSpec((1, N, D), lambda b, qi: (b, 0, 2))
    row_spec = pl.BlockSpec((1, D), lambda b, qi: (0, 0))

    return pl.pallas_call(
        functools.partial(_attn_proj_kernel, num_heads=num_heads,
                          dh=D // num_heads, scale=scale, n_valid=n_valid),
        grid=(B, nq),
        in_specs=[q_spec, k_spec, v_spec,
                  pl.BlockSpec((1, tq, D), lambda b, qi: (b, qi, 0)),
                  pl.BlockSpec((D, D), lambda b, qi: (0, 0)),
                  row_spec, row_spec],
        out_specs=pl.BlockSpec((1, tq, D), lambda b, qi: (b, qi, 0)),
        out_shape=jax.ShapeDtypeStruct((B, N, D), jnp.bfloat16),
        compiler_params=pltpu.CompilerParams(
            dimension_semantics=("parallel", "parallel"),
            vmem_limit_bytes=64 * 1024 * 1024),
    )(qkv, qkv, qkv, x_res, w_proj,
      b_proj.reshape(1, D).astype(jnp.float32), ls.reshape(1, D))


# ----------------------------------------------------------------------------
# fused SALAD head: final LN + 3 MLP chains + dustbin Sinkhorn + aggregation
# ----------------------------------------------------------------------------
def _salad_head_kernel(pat_ref, cls_ref, ng_ref, nb_ref,
                       cf1w_ref, cf1b_ref, cf2w_ref, cf2b_ref,
                       sc1w_ref, sc1b_ref, sc2w_ref, sc2b_ref,
                       tf1w_ref, tf1b_ref, tf2w_ref, tf2b_ref,
                       loga_ref, ot_ref, oa_ref, *, n, m, iters, eps):
    def ln(z_ref):
        z = z_ref[0].astype(jnp.float32)
        mu = jnp.mean(z, axis=-1, keepdims=True)
        zc = z - mu
        var = jnp.mean(zc * zc, axis=-1, keepdims=True)
        return (zc * jax.lax.rsqrt(var + eps) * ng_ref[...]
                + nb_ref[...]).astype(jnp.bfloat16)

    pat = ln(pat_ref)                    # (n, D) bf16   final backbone LN
    cls = ln(cls_ref)                    # (1, D) bf16

    def mlp(z, w1_ref, b1_ref, w2_ref, b2_ref):
        h = jnp.dot(z, w1_ref[...], preferred_element_type=jnp.float32) + b1_ref[...]
        h = jnp.maximum(h, 0.0).astype(jnp.bfloat16)
        return jnp.dot(h, w2_ref[...], preferred_element_type=jnp.float32) + b2_ref[...]

    f = mlp(pat, cf1w_ref, cf1b_ref, cf2w_ref, cf2b_ref)       # (n, l)
    # score MLP weights were augmented on the host with a zero column whose
    # bias is the dustbin parameter -> Mt already includes the dustbin column.
    Mt = mlp(pat, sc1w_ref, sc1b_ref, sc2w_ref, sc2b_ref)      # (n, m+1)
    t = mlp(cls, tf1w_ref, tf1b_ref, tf2w_ref, tf2b_ref)       # (1, tok)

    # log-domain Sinkhorn (token-major orientation, f32)
    norm = -math.log(n + m)
    log_a = loga_ref[...]                                      # (1, m+1)

    def lse(z, axis):
        mx = jnp.max(z, axis=axis, keepdims=True)
        return mx + jnp.log(jnp.sum(jnp.exp(z - mx), axis=axis, keepdims=True))

    u = jnp.zeros((1, m + 1), jnp.float32)
    v = jnp.zeros((n, 1), jnp.float32)
    for _ in range(iters):
        u = log_a - lse(Mt + v, axis=0)
        v = norm - lse(Mt + u, axis=1)
    p = jnp.exp(Mt + u + v - norm)[:, :m]                      # (n, m) drop dustbin

    # aggregate cluster features + cascade of L2 normalizations
    agg = jax.lax.dot_general(f, p, (((0,), (0,)), ((), ())),
                              preferred_element_type=jnp.float32)   # (l, m)
    agg = agg * jax.lax.rsqrt(jnp.sum(agg * agg, axis=0, keepdims=True) + 1e-24)
    t = t * jax.lax.rsqrt(jnp.sum(t * t, axis=1, keepdims=True) + 1e-24)
    tot = jax.lax.rsqrt(jnp.sum(t * t) + jnp.sum(agg * agg) + 1e-24)
    ot_ref[0] = t * tot
    oa_ref[0] = agg * tot


def salad_head(x, params, cfg, n):
    B, N, D = x.shape
    l = cfg["cluster_dim"]
    m = cfg["num_clusters"]
    tok = cfg["token_dim"]
    hid = cfg["salad_hidden"]
    assert n > m, "Sinkhorn dustbin marginal requires num_patches > num_clusters"

    # cheap host-side slices (no transpose); LN is row-wise so applying it
    # inside the kernel to the split parts is exactly equivalent.
    x_cls = x[:, :1, :]
    x_pat = x[:, 1:, :]

    # fold the dustbin into the score MLP: extra zero-weight column with the
    # dustbin parameter as its bias -> scores come out already augmented.
    sc2_w = jnp.concatenate(
        [params["sc2_w"], jnp.zeros((hid, 1), params["sc2_w"].dtype)], axis=1)
    sc2_b = jnp.concatenate(
        [params["sc2_b"], params["dust_bin"].reshape(1)], axis=0)

    norm_const = -math.log(n + m)
    log_a = np.full((1, m + 1), norm_const, np.float32)
    log_a[0, m] += math.log(n - m)
    log_a = jnp.asarray(log_a)

    weights = [params["norm_g"].reshape(1, D), params["norm_b"].reshape(1, D),
               params["cf1_w"], params["cf1_b"].reshape(1, hid),
               params["cf2_w"], params["cf2_b"].reshape(1, l),
               params["sc1_w"], params["sc1_b"].reshape(1, hid),
               sc2_w, sc2_b.reshape(1, m + 1),
               params["tf1_w"], params["tf1_b"].reshape(1, hid),
               params["tf2_w"], params["tf2_b"].reshape(1, tok),
               log_a]

    def fullspec(a):
        shape = a.shape
        return pl.BlockSpec(shape, lambda b: (0,) * len(shape))

    t_part, a_part = pl.pallas_call(
        functools.partial(_salad_head_kernel, n=n, m=m, iters=3, eps=1e-6),
        grid=(B,),
        in_specs=[pl.BlockSpec((1, n, D), lambda b: (b, 0, 0)),
                  pl.BlockSpec((1, 1, D), lambda b: (b, 0, 0))]
                 + [fullspec(wt) for wt in weights],
        out_specs=[pl.BlockSpec((1, 1, tok), lambda b: (b, 0, 0)),
                   pl.BlockSpec((1, l, m), lambda b: (b, 0, 0))],
        out_shape=(jax.ShapeDtypeStruct((B, 1, tok), jnp.float32),
                   jax.ShapeDtypeStruct((B, l, m), jnp.float32)),
        compiler_params=pltpu.CompilerParams(dimension_semantics=("parallel",)),
    )(x_pat, x_cls, *weights)

    # layout glue: row-major flatten of (l, m) (== torch .flatten(1)) + concat
    return jnp.concatenate([t_part.reshape(B, tok), a_part.reshape(B, l * m)],
                           axis=-1)


# ----------------------------------------------------------------------------
# fused antialiased bilinear resize (height + width pass, all channels / step)
# ----------------------------------------------------------------------------
def _resize_kernel(img_ref, wh_ref, ww_ref, o_ref, *, C):
    wh = wh_ref[...]
    ww = ww_ref[...]
    for c in range(C):                       # static channel loop per image
        img = img_ref[0, c].astype(jnp.bfloat16)
        tmp = jnp.dot(wh, img, preferred_element_type=jnp.float32)
        o_ref[0, c] = jnp.dot(tmp.astype(jnp.bfloat16), ww,
                              preferred_element_type=jnp.float32).astype(o_ref.dtype)


def _resize_matrix(in_size, out_size):
    """Antialiased bilinear (triangle filter) resize matrix, PIL/torchvision
    semantics (resize(..., antialias=True))."""
    scale = in_size / out_size
    filterscale = max(scale, 1.0)
    support = 1.0 * filterscale
    W = np.zeros((out_size, in_size), np.float64)
    for i in range(out_size):
        center = (i + 0.5) * scale
        xmin = max(int(center - support + 0.5), 0)
        xmax = min(int(center + support + 0.5), in_size)
        xs = np.arange(xmin, xmax)
        w = 1.0 - np.abs((xs + 0.5 - center) / filterscale)
        w = np.clip(w, 0.0, None)
        ssum = w.sum()
        if ssum > 0:
            w = w / ssum
        W[i, xmin:xmax] = w
    return W.astype(np.float32)


def resize_bilinear_aa(images, h_out, w_out):
    B, C, H, W = images.shape
    wh = jnp.asarray(_resize_matrix(H, h_out)).astype(jnp.bfloat16)    # (h_out, H)
    ww = jnp.asarray(_resize_matrix(W, w_out).T).astype(jnp.bfloat16)  # (W, w_out)
    return pl.pallas_call(
        functools.partial(_resize_kernel, C=C),
        grid=(B,),
        in_specs=[pl.BlockSpec((1, C, H, W), lambda b: (b, 0, 0, 0)),
                  pl.BlockSpec((h_out, H), lambda b: (0, 0)),
                  pl.BlockSpec((W, w_out), lambda b: (0, 0))],
        out_specs=pl.BlockSpec((1, C, h_out, w_out), lambda b: (b, 0, 0, 0)),
        out_shape=jax.ShapeDtypeStruct((B, C, h_out, w_out), jnp.bfloat16),
        compiler_params=pltpu.CompilerParams(dimension_semantics=("parallel",)),
    )(images, wh, ww)


# ----------------------------------------------------------------------------
# parameters + network composition
# ----------------------------------------------------------------------------
def make_params(key, cfg, in_chans, n_patch):
    D = cfg["embed_dim"]
    keys = iter(jax.random.split(key, 128))

    def nrm(shape, s=0.02, dtype=jnp.bfloat16):
        return (jax.random.normal(next(keys), shape, jnp.float32) * s).astype(dtype)

    p = {}
    # matmul weights are created/streamed in bf16 (no in-kernel casts);
    # LN params, biases, LayerScale, cls/pos embeddings stay f32.
    p["patch_w"] = nrm((in_chans * 14 * 14, D))
    p["patch_b"] = jnp.zeros((D,), jnp.float32)
    p["cls_token"] = nrm((1, 1, D), dtype=jnp.float32)
    p["pos_embed"] = nrm((1, n_patch + 1, D), dtype=jnp.float32)

    blocks = []
    for _ in range(cfg["depth"]):
        blocks.append(dict(
            ln1_g=jnp.ones((D,), jnp.float32), ln1_b=jnp.zeros((D,), jnp.float32),
            qkv_w=nrm((D, 3 * D)), qkv_b=jnp.zeros((3 * D,), jnp.float32),
            proj_w=nrm((D, D)), proj_b=jnp.zeros((D,), jnp.float32),
            ls1=jnp.full((D,), 0.1, jnp.float32),
            ln2_g=jnp.ones((D,), jnp.float32), ln2_b=jnp.zeros((D,), jnp.float32),
            fc1_w=nrm((D, cfg["mlp_dim"])),
            fc1_b=jnp.zeros((cfg["mlp_dim"],), jnp.float32),
            fc2_w=nrm((cfg["mlp_dim"], D)), fc2_b=jnp.zeros((D,), jnp.float32),
            ls2=jnp.full((D,), 0.1, jnp.float32)))
    p["blocks"] = blocks
    p["norm_g"] = jnp.ones((D,), jnp.float32)
    p["norm_b"] = jnp.zeros((D,), jnp.float32)

    hid = cfg["salad_hidden"]
    l, m, tok = cfg["cluster_dim"], cfg["num_clusters"], cfg["token_dim"]
    p["cf1_w"] = nrm((D, hid)); p["cf1_b"] = jnp.zeros((hid,), jnp.float32)
    p["cf2_w"] = nrm((hid, l)); p["cf2_b"] = jnp.zeros((l,), jnp.float32)
    p["sc1_w"] = nrm((D, hid)); p["sc1_b"] = jnp.zeros((hid,), jnp.float32)
    p["sc2_w"] = nrm((hid, m)); p["sc2_b"] = jnp.zeros((m,), jnp.float32)
    p["tf1_w"] = nrm((D, hid)); p["tf1_b"] = jnp.zeros((hid,), jnp.float32)
    p["tf2_w"] = nrm((hid, tok)); p["tf2_b"] = jnp.zeros((tok,), jnp.float32)
    p["dust_bin"] = jnp.array(1.0, jnp.float32)
    return p


def vit_block(x, bp, num_heads, n_valid):
    B, N, D = x.shape
    dh = D // num_heads
    x2 = x.reshape(B * N, D)

    # LN1 + fused QKV projection (one kernel), fused qkv stays packed
    qkv = fused_linear(x2, bp["qkv_w"], bp["qkv_b"],
                       ln_g=bp["ln1_g"], ln_b=bp["ln1_b"])           # (B*N, 3D) bf16
    qkv = qkv.reshape(B, N, 3 * D)                                   # no split

    # multi-head attention + output proj + LayerScale + residual (one kernel)
    x = attention_proj(qkv, x, bp["proj_w"], bp["proj_b"], bp["ls1"],
                       num_heads=num_heads, scale=dh ** -0.5, n_valid=n_valid)
    x2 = x.reshape(B * N, D)

    # LN2 + fc1 + GELU (one kernel) ; fc2 + LayerScale + residual (one kernel)
    h = fused_linear(x2, bp["fc1_w"], bp["fc1_b"],
                     ln_g=bp["ln2_g"], ln_b=bp["ln2_b"], activation="gelu")
    x2 = fused_linear(h, bp["fc2_w"], bp["fc2_b"], residual=x2, ls=bp["ls2"])
    return x2.reshape(B, N, D)


def salad_forward(images, params, cfg):
    B, C, H, W = images.shape
    D = cfg["embed_dim"]
    heads = cfg["num_heads"]
    h_out = int(round(H / 14)) * 14
    w_out = int(round(W / 14)) * 14

    # antialiased bilinear resize (fused height+width pass, bf16 output)
    x = resize_bilinear_aa(images, h_out, w_out)                     # (B,C,h,w) bf16

    # patch embed: 14x14 stride-14 conv == matmul over flattened patches
    gh, gw = h_out // 14, w_out // 14
    n = gh * gw
    # TODO(synk): fold this patch-extraction transpose into the resize kernel's
    # output layout at real scale (tiny host-side copy here).
    patches = x.reshape(B, C, gh, 14, gw, 14).transpose(0, 2, 4, 1, 3, 5)
    patches = patches.reshape(B * n, C * 14 * 14)
    m_rows = B * n
    pad_rows = -m_rows % 16                       # 16-aligned bf16 sublanes
    if pad_rows:
        patches = jnp.pad(patches, ((0, pad_rows), (0, 0)))
    tok = fused_linear(patches, params["patch_w"], params["patch_b"])[:m_rows]
    tok = tok.reshape(B, n, D).astype(jnp.float32)

    cls = jnp.broadcast_to(params["cls_token"], (B, 1, D))
    x = jnp.concatenate([cls, tok], axis=1) + params["pos_embed"]    # (B, n+1, D)

    # pad token axis to a multiple of 16; padded keys are masked in attention,
    # padded rows are row-local elsewhere and sliced off before the head.
    n_tok = n + 1
    pad_tok = -n_tok % 16
    if pad_tok:
        x = jnp.pad(x, ((0, 0), (0, pad_tok), (0, 0)))
    x = x.astype(jnp.bfloat16)                                       # (B, Np, D)

    # transformer blocks
    for bp in params["blocks"]:
        x = vit_block(x, bp, heads, n_valid=n_tok)

    # SALAD head (final LN + MLPs + Sinkhorn + aggregation, fused)
    x = x[:, :n_tok, :]
    return salad_head(x, params, cfg, n)


# ----------------------------------------------------------------------------
if __name__ == "__main__":
    key = jax.random.PRNGKey(0)
    kimg, kparam = jax.random.split(key)

    # embed_dim=128 keeps every epilogue store lane-dense (real DINOv2 D=768
    # is already a multiple of 128); dh=64 matches the real head dim.
    cfg = dict(embed_dim=128, depth=2, num_heads=2, mlp_dim=256,
               salad_hidden=32, cluster_dim=16, num_clusters=8, token_dim=32)

    images = jax.random.normal(kimg, (2, 3, 64, 64), jnp.float32)    # NCHW
    B, C, H, W = images.shape
    h_out = int(round(H / 14)) * 14
    w_out = int(round(W / 14)) * 14
    n_patch = (h_out // 14) * (w_out // 14)        # 25 patches (> num_clusters)

    params = make_params(kparam, cfg, in_chans=C, n_patch=n_patch)

    out = salad_forward(images, params, cfg)
    out = jax.block_until_ready(out)

    expected_dim = cfg["token_dim"] + cfg["cluster_dim"] * cfg["num_clusters"]
    assert out.shape == (B, expected_dim), out.shape
    assert bool(jnp.all(jnp.isfinite(out)))
    # descriptors are L2-normalized
    assert bool(jnp.allclose(jnp.linalg.norm(out, axis=-1), 1.0, atol=1e-4))
    print("KERNEL_OK")
</pallas_src>

<mosaic_0001>
module attributes {stable_mosaic.version = 11 : i64} {
  func.func @_resize_kernel(%arg0: i32, %arg1: memref<1x3x64x64xf32, #tpu.memory_space<vmem>>, %arg2: memref<70x64xbf16, #tpu.memory_space<vmem>>, %arg3: memref<64x70xbf16, #tpu.memory_space<vmem>>, %arg4: memref<1x3x70x70xbf16, #tpu.memory_space<vmem>>) attributes {dimension_semantics = [#tpu.dimension_semantics<parallel>], iteration_bounds = array<i64: 2>, scalar_prefetch = 0 : i64, scratch_operands = 0 : i64, tpu.core_type = #tpu.core_type<tc>, window_params = [{transform_indices = @transform_0, window_bounds = array<i64: 1, 3, 64, 64>}, {pipeline_mode = #tpu.pipeline_mode<synchronous>, transform_indices = @transform_1, window_bounds = array<i64: 70, 64>}, {pipeline_mode = #tpu.pipeline_mode<synchronous>, transform_indices = @transform_2, window_bounds = array<i64: 64, 70>}, {transform_indices = @transform_3, window_bounds = array<i64: 1, 3, 70, 70>}]} {
    %c0 = arith.constant 0 : index
    %c0_0 = arith.constant 0 : index
    %0 = vector.load %arg2[%c0, %c0_0] : memref<70x64xbf16, #tpu.memory_space<vmem>>, vector<70x64xbf16>
    %c0_1 = arith.constant 0 : index
    %c0_2 = arith.constant 0 : index
    %1 = vector.load %arg3[%c0_1, %c0_2] : memref<64x70xbf16, #tpu.memory_space<vmem>>, vector<64x70xbf16>
    %c0_3 = arith.constant 0 : index
    %c0_4 = arith.constant 0 : index
    %c0_5 = arith.constant 0 : index
    %c0_6 = arith.constant 0 : index
    %2 = vector.load %arg1[%c0_3, %c0_4, %c0_5, %c0_6] : memref<1x3x64x64xf32, #tpu.memory_space<vmem>>, vector<1x1x64x64xf32>
    %3 = vector.shape_cast %2 : vector<1x1x64x64xf32> to vector<64x64xf32>
    %4 = arith.truncf %3 : vector<64x64xf32> to vector<64x64xbf16>
    %cst = arith.constant dense<0.000000e+00> : vector<70x64xf32>
    %5 = tpu.matmul %0, %4, %cst {dimension_numbers = #tpu.dot_dimension_numbers<[1], [0], [0], [1], [0, 0, 1, 1], [], []>} : vector<70x64xbf16>, vector<64x64xbf16>, vector<70x64xf32> -> vector<70x64xf32>
    %6 = arith.truncf %5 : vector<70x64xf32> to vector<70x64xbf16>
    %cst_7 = arith.constant dense<0.000000e+00> : vector<70x70xf32>
    %7 = tpu.matmul %6, %1, %cst_7 {dimension_numbers = #tpu.dot_dimension_numbers<[1], [0], [0], [1], [0, 0, 1, 1], [], []>} : vector<70x64xbf16>, vector<64x70xbf16>, vector<70x70xf32> -> vector<70x70xf32>
    %8 = arith.truncf %7 : vector<70x70xf32> to vector<70x70xbf16>
    %c0_8 = arith.constant 0 : index
    %c0_9 = arith.constant 0 : index
    %c0_10 = arith.constant 0 : index
    %c0_11 = arith.constant 0 : index
    %9 = vector.load %arg4[%c0_8, %c0_9, %c0_10, %c0_11] : memref<1x3x70x70xbf16, #tpu.memory_space<vmem>>, vector<1x1x70x70xbf16>
    %10 = vector.shape_cast %9 : vector<1x1x70x70xbf16> to vector<70x70xbf16>
    %11 = vector.shape_cast %8 : vector<70x70xbf16> to vector<1x1x70x70xbf16>
    tpu.vector_store %arg4[%c0_8, %c0_9, %c0_10, %c0_11], %11 {strides = array<i32>} : memref<1x3x70x70xbf16, #tpu.memory_space<vmem>>, vector<1x1x70x70xbf16>,
    %c0_12 = arith.constant 0 : index
    %c1 = arith.constant 1 : index
    %c0_13 = arith.constant 0 : index
    %c0_14 = arith.constant 0 : index
    %12 = vector.load %arg1[%c0_12, %c1, %c0_13, %c0_14] : memref<1x3x64x64xf32, #tpu.memory_space<vmem>>, vector<1x1x64x64xf32>
    %13 = vector.shape_cast %12 : vector<1x1x64x64xf32> to vector<64x64xf32>
    %14 = arith.truncf %13 : vector<64x64xf32> to vector<64x64xbf16>
    %cst_15 = arith.constant dense<0.000000e+00> : vector<70x64xf32>
    %15 = tpu.matmul %0, %14, %cst_15 {dimension_numbers = #tpu.dot_dimension_numbers<[1], [0], [0], [1], [0, 0, 1, 1], [], []>} : vector<70x64xbf16>, vector<64x64xbf16>, vector<70x64xf32> -> vector<70x64xf32>
    %16 = arith.truncf %15 : vector<70x64xf32> to vector<70x64xbf16>
    %cst_16 = arith.constant dense<0.000000e+00> : vector<70x70xf32>
    %17 = tpu.matmul %16, %1, %cst_16 {dimension_numbers = #tpu.dot_dimension_numbers<[1], [0], [0], [1], [0, 0, 1, 1], [], []>} : vector<70x64xbf16>, vector<64x70xbf16>, vector<70x70xf32> -> vector<70x70xf32>
    %18 = arith.truncf %17 : vector<70x70xf32> to vector<70x70xbf16>
    %c0_17 = arith.constant 0 : index
    %c1_18 = arith.constant 1 : index
    %c0_19 = arith.constant 0 : index
    %c0_20 = arith.constant 0 : index
    %19 = vector.load %arg4[%c0_17, %c1_18, %c0_19, %c0_20] : memref<1x3x70x70xbf16, #tpu.memory_space<vmem>>, vector<1x1x70x70xbf16>
    %20 = vector.shape_cast %19 : vector<1x1x70x70xbf16> to vector<70x70xbf16>
    %21 = vector.shape_cast %18 : vector<70x70xbf16> to vector<1x1x70x70xbf16>
    tpu.vector_store %arg4[%c0_17, %c1_18, %c0_19, %c0_20], %21 {strides = array<i32>} : memref<1x3x70x70xbf16, #tpu.memory_space<vmem>>, vector<1x1x70x70xbf16>,
    %c0_21 = arith.constant 0 : index
    %c2 = arith.constant 2 : index
    %c0_22 = arith.constant 0 : index
    %c0_23 = arith.constant 0 : index
    %22 = vector.load %arg1[%c0_21, %c2, %c0_22, %c0_23] : memref<1x3x64x64xf32, #tpu.memory_space<vmem>>, vector<1x1x64x64xf32>
    %23 = vector.shape_cast %22 : vector<1x1x64x64xf32> to vector<64x64xf32>
    %24 = arith.truncf %23 : vector<64x64xf32> to vector<64x64xbf16>
    %cst_24 = arith.constant dense<0.000000e+00> : vector<70x64xf32>
    %25 = tpu.matmul %0, %24, %cst_24 {dimension_numbers = #tpu.dot_dimension_numbers<[1], [0], [0], [1], [0, 0, 1, 1], [], []>} : vector<70x64xbf16>, vector<64x64xbf16>, vector<70x64xf32> -> vector<70x64xf32>
    %26 = arith.truncf %25 : vector<70x64xf32> to vector<70x64xbf16>
    %cst_25 = arith.constant dense<0.000000e+00> : vector<70x70xf32>
    %27 = tpu.matmul %26, %1, %cst_25 {dimension_numbers = #tpu.dot_dimension_numbers<[1], [0], [0], [1], [0, 0, 1, 1], [], []>} : vector<70x64xbf16>, vector<64x70xbf16>, vector<70x70xf32> -> vector<70x70xf32>
    %28 = arith.truncf %27 : vector<70x70xf32> to vector<70x70xbf16>
    %c0_26 = arith.constant 0 : index
    %c2_27 = arith.constant 2 : index
    %c0_28 = arith.constant 0 : index
    %c0_29 = arith.constant 0 : index
    %29 = vector.load %arg4[%c0_26, %c2_27, %c0_28, %c0_29] : memref<1x3x70x70xbf16, #tpu.memory_space<vmem>>, vector<1x1x70x70xbf16>
    %30 = vector.shape_cast %29 : vector<1x1x70x70xbf16> to vector<70x70xbf16>
    %31 = vector.shape_cast %28 : vector<70x70xbf16> to vector<1x1x70x70xbf16>
    tpu.vector_store %arg4[%c0_26, %c2_27, %c0_28, %c0_29], %31 {strides = array<i32>} : memref<1x3x70x70xbf16, #tpu.memory_space<vmem>>, vector<1x1x70x70xbf16>,
    return
  }
  func.func @transform_0(%arg0: i32) -> (i32, i32, i32, i32) {
    %c0_i32 = arith.constant 0 : i32
    %c0_i32_0 = arith.constant 0 : i32
    %c0_i32_1 = arith.constant 0 : i32
    %c0_i32_2 = arith.constant 0 : i32
    return %arg0, %c0_i32, %c0_i32_0, %c0_i32_1 : i32, i32, i32, i32
  }
  func.func @transform_1(%arg0: i32) -> (i32, i32) {
    %c0_i32 = arith.constant 0 : i32
    %c0_i32_0 = arith.constant 0 : i32
    %c0_i32_1 = arith.constant 0 : i32
    return %c0_i32, %c0_i32_0 : i32, i32
  }
  func.func @transform_2(%arg0: i32) -> (i32, i32) {
    %c0_i32 = arith.constant 0 : i32
    %c0_i32_0 = arith.constant 0 : i32
    %c0_i32_1 = arith.constant 0 : i32
    return %c0_i32, %c0_i32_0 : i32, i32
  }
  func.func @transform_3(%arg0: i32) -> (i32, i32, i32, i32) {
    %c0_i32 = arith.constant 0 : i32
    %c0_i32_0 = arith.constant 0 : i32
    %c0_i32_1 = arith.constant 0 : i32
    %c0_i32_2 = arith.constant 0 : i32
    return %arg0, %c0_i32, %c0_i32_0, %c0_i32_1 : i32, i32, i32, i32
  }
}

</mosaic_0001>

<llo_original>
// kernel: tpu_custom_call.1
$region0: #{tpu_custom_call.1}
  #allocation0 [shape = 'u32[]', space=smem, size = 0x4, offset = 0x4, fixed_abs, tag = 'smem constant byte address 0x4 - core index']
  #allocation1 [shape = 'u32[144,128]{1,0:T(1,128)}', space=vmem, size = 0x12000, scoped, tag = 'internal scratch']
  %s0 = inlined_call_operand.hbm [shape: f32[2,3,64,64], index: 0, kind: input, shape index: {}]
  %s1 = inlined_call_operand.vmem [shape: bf16[70,64], index: 1, kind: input, shape index: {}]
  %s2 = inlined_call_operand.vmem [shape: bf16[64,70], index: 2, kind: input, shape index: {}]
  %s3 = inlined_call_operand.vmem [shape: bf16[2,3,70,70], index: 3, kind: output, shape index: {}]
  %s4 = sld [smem:[#allocation0]]
  $region49: #{tpu_custom_call.1} parent=0
    _
  %s6 = ssub.s32 1, %s4
  %s7 = scalar_select 0, %s6, %s4
  $region1: #{tpu_custom_call.1} parent=0
    #allocation2 [shape = 'u8[196608]{0}', space=vmem, size = 0x30000, scoped, tag = 'input window, operand 0']
    #allocation3 [shape = 's32[2]{0}', space=sflag, size = 0x8, scoped, tag = 'scoped memory for tpu_custom_call.1']
    %8 = vsyncpa [#allocation3], 0
    %s9 = scalar_lea.sflag [#allocation3], 1
    %10 = vsyncpa %s9, 0
    loop: start=0, step=1, limit=4
    $region2: #{tpu_custom_call.1} parent=1 // loop_pre_header
      _
    $region3: #{tpu_custom_call.1} parent=1 // loop_header
      %s12 = sphi 0, %s16
      %p13 = scmp.ge.s32.totalorder %s12, 4
      %s22 = sphi 0, %s24
      %s25 = sphi 0, %s22
      %s26 = sphi 0, %s25
      %s42 = sphi 0, %s26
      %s46 = sphi 0, %s46
      %s48 = sphi 0, %s46
      %s49 = sphi 0, %s48
      %s63 = sphi 0, %s49
      %s67 = sphi 0, %s67
      %s69 = sphi 0, %s67
      %s70 = sphi 0, %s69
      %s84 = sphi 0, %s70
      %s90 = sphi 0, %s92
      %s93 = sphi 0, %s90
      %s94 = sphi 0, %s93
      %s110 = sphi 0, %s94
    $region4: #{tpu_custom_call.1} parent=1 // loop_header_branch
      %15 = sbr.rel (%p13) target = $region8
    $region5: #{tpu_custom_call.1} parent=1 // loop_body
      %s17 = ssub.s32 %s12, 1
      %s18 = ssub.s32 %s12, 2
      %s19 = sadd.s32 %s12, 1
      %s20 = ssub.s32 %s12, %s19
      %p21 = scmp.eq.s32.totalorder %s20, 0
      %s23 = sadd.s32 %s22, 1
      %s24 = scalar_select %p21, %s22, %s23
      %p27 = pneg %p21
      %p28 = scmp.eq.s32.totalorder %s12, 1
      %p29 = por %p27, %p28
      %p30 = scmp.ne.s32.totalorder %s22, %s25
      %p31 = scmp.eq.s32.totalorder %s12, 0
      %p32 = por %p30, %p31
      %p33 = scmp.ne.s32.totalorder %s22, %s25
      %p34 = scmp.eq.s32.totalorder %s17, 1
      %p35 = por %p33, %p34
      %p36 = scmp.ne.s32.totalorder %s25, %s26
      %p37 = scmp.eq.s32.totalorder %s17, 0
      %p38 = por %p36, %p37
      %p39 = scmp.ne.s32.totalorder %s25, %s26
      %p40 = scmp.eq.s32.totalorder %s18, 1
      %p41 = por %p39, %p40
      %p43 = scmp.ne.s32.totalorder %s26, %s42
      %p44 = scmp.eq.s32.totalorder %s18, 0
      %p45 = por %p43, %p44
      %s47 = sadd.s32 %s46, 1
      %p50 = scmp.eq.s32.totalorder %s12, 1
      %p51 = scmp.ne.s32.totalorder %s46, %s48
      %p52 = scmp.eq.s32.totalorder %s12, 0
      %p53 = por %p51, %p52
      %p54 = scmp.ne.s32.totalorder %s46, %s48
      %p55 = scmp.eq.s32.totalorder %s17, 1
      %p56 = por %p54, %p55
      %p57 = scmp.ne.s32.totalorder %s48, %s49
      %p58 = scmp.eq.s32.totalorder %s17, 0
      %p59 = por %p57, %p58
      %p60 = scmp.ne.s32.totalorder %s48, %s49
      %p61 = scmp.eq.s32.totalorder %s18, 1
      %p62 = por %p60, %p61
      %p64 = scmp.ne.s32.totalorder %s49, %s63
      %p65 = scmp.eq.s32.totalorder %s18, 0
      %p66 = por %p64, %p65
      %s68 = sadd.s32 %s67, 1
      %p71 = scmp.eq.s32.totalorder %s12, 1
      %p72 = scmp.ne.s32.totalorder %s67, %s69
      %p73 = scmp.eq.s32.totalorder %s12, 0
      %p74 = por %p72, %p73
      %p75 = scmp.ne.s32.totalorder %s67, %s69
      %p76 = scmp.eq.s32.totalorder %s17, 1
      %p77 = por %p75, %p76
      %p78 = scmp.ne.s32.totalorder %s69, %s70
      %p79 = scmp.eq.s32.totalorder %s17, 0
      %p80 = por %p78, %p79
      %p81 = scmp.ne.s32.totalorder %s69, %s70
      %p82 = scmp.eq.s32.totalorder %s18, 1
      %p83 = por %p81, %p82
      %p85 = scmp.ne.s32.totalorder %s70, %s84
      %p86 = scmp.eq.s32.totalorder %s18, 0
      %p87 = por %p85, %p86
      %s88 = ssub.s32 %s12, %s19
      %p89 = scmp.eq.s32.totalorder %s88, 0
      %s91 = sadd.s32 %s90, 1
      %s92 = scalar_select %p89, %s90, %s91
      %p95 = pneg %p89
      %p96 = scmp.eq.s32.totalorder %s12, 1
      %p97 = por %p95, %p96
      %p98 = scmp.ne.s32.totalorder %s90, %s93
      %p99 = scmp.eq.s32.totalorder %s12, 0
      %p100 = por %p98, %p99
      %p101 = scmp.ne.s32.totalorder %s90, %s93
      %p102 = scmp.eq.s32.totalorder %s17, 1
      %p103 = por %p101, %p102
      %p104 = scmp.ne.s32.totalorder %s93, %s94
      %p105 = scmp.eq.s32.totalorder %s17, 0
      %p106 = por %p104, %p105
      %p107 = scmp.ne.s32.totalorder %s93, %s94
      %p108 = scmp.eq.s32.totalorder %s18, 1
      %p109 = por %p107, %p108
      %p111 = scmp.ne.s32.totalorder %s94, %s110
      %p112 = scmp.eq.s32.totalorder %s18, 0
      %p113 = por %p111, %p112
      %p114 = scmp.le.s32.totalorder 1, %s12
      %p115 = scmp.lt.s32.totalorder %s12, 3
      %p116 = pnand %p114, %p115
      %p117 = pneg %p116
      // Predicated region
      $region9: #{tpu_custom_call.1} parent=5 // pred_check
        _
      $region10: #{tpu_custom_call.1} parent=5 // pred_check_branch
        %119 = sbr.rel (%p116) target = $region12
      $region11: #{tpu_custom_call.1} parent=5 // pred_region
        %s120 = ssub.s32 %s12, 1
        // Predicated region
        $region13: #{tpu_custom_call.1} parent=11 // pred_check
          %p121 = pneg %p59
        $region14: #{tpu_custom_call.1} parent=11 // pred_check_branch
          %123 = sbr.rel (%p121) target = $region16
        $region15: #{tpu_custom_call.1} parent=11 // pred_region
          _
        $region16: #{tpu_custom_call.1} parent=11 // pred_fallthru
          _
        // Predicated region
        $region17: #{tpu_custom_call.1} parent=11 // pred_check
          %p124 = pneg %p80
        $region18: #{tpu_custom_call.1} parent=11 // pred_check_branch
          %126 = sbr.rel (%p124) target = $region20
        $region19: #{tpu_custom_call.1} parent=11 // pred_region
          _
        $region20: #{tpu_custom_call.1} parent=11 // pred_fallthru
          _
      $region12: #{tpu_custom_call.1} parent=5 // pred_fallthru
        _
      %p127 = scmp.lt.s32.totalorder %s12, 2
      // Predicated region
      $region21: #{tpu_custom_call.1} parent=5 // pred_check
        %p128 = pneg %p127
      $region22: #{tpu_custom_call.1} parent=5 // pred_check_branch
        %130 = sbr.rel (%p128) target = $region24
      $region23: #{tpu_custom_call.1} parent=5 // pred_region
        // Predicated region
        $region25: #{tpu_custom_call.1} parent=23 // pred_check
          %p131 = pneg %p32
        $region26: #{tpu_custom_call.1} parent=23 // pred_check_branch
          %133 = sbr.rel (%p131) target = $region28
        $region27: #{tpu_custom_call.1} parent=23 // pred_region
          %s134 = sand.u32 %s22, 1
          %s135 = scalar_lea.sflag [#allocation3], %s134
          %s136 = sand.u32 %s22, 1
          %s137 = smul.addr %s136, 192
          %s138 = scalar_lea.vmem [#allocation2], %s137
          %s140 = ssub.s32 3072, 3072
          %141 = vsyncadd %s135, %s140
          %s142 = smul.addr %s12, 24
          %s143 = smul.addr %s142, 128
          %s144 = scalar_lea.hbm %s0, %s143
          %s145 = sshll.u32 %s138, 4
          %s146 = int_to_ptr.vmem [resolvable:$true] %s145
          %151 = dma.hbm_to_vmem [thread:$0]  %s144, 3072, %s146, %s135, 128, 128, 8
        $region28: #{tpu_custom_call.1} parent=23 // pred_fallthru
          _
      $region24: #{tpu_custom_call.1} parent=5 // pred_fallthru
        _
      %p152 = scmp.le.s32.totalorder 1, %s12
      %p153 = scmp.lt.s32.totalorder %s12, 3
      %p154 = pnand %p152, %p153
      %p155 = pneg %p154
      // Predicated region
      $region29: #{tpu_custom_call.1} parent=5 // pred_check
        _
      $region30: #{tpu_custom_call.1} parent=5 // pred_check_branch
        %157 = sbr.rel (%p154) target = $region32
      $region31: #{tpu_custom_call.1} parent=5 // pred_region
        %s158 = ssub.s32 %s12, 1
        %s159 = sand.u32 %s25, 1
        %s160 = scalar_lea.sflag [#allocation3], %s159
        %s161 = sand.u32 %s25, 1
        %s162 = smul.addr %s161, 192
        %s163 = scalar_lea.vmem [#allocation2], %s162
        // Predicated region
        $region33: #{tpu_custom_call.1} parent=31 // pred_check
          %p164 = pneg %p38
        $region34: #{tpu_custom_call.1} parent=31 // pred_check_branch
          %166 = sbr.rel (%p164) target = $region36
        $region35: #{tpu_custom_call.1} parent=31 // pred_region
          %167 = dma.done %s160, 3072
        $region36: #{tpu_custom_call.1} parent=31 // pred_fallthru
          _
        %s168 = sand.u32 %s25, 1
        %s169 = scalar_lea.sflag [#allocation3], %s168
        %s170 = sand.u32 %s25, 1
        %s171 = smul.addr %s170, 192
        %s172 = scalar_lea.vmem [#allocation2], %s171
        %p173 = pneg %p38
        %p174 = pneg %p35
        %p175 = pneg %p59
        %p176 = pneg %p56
        %p177 = pneg %p80
        %p178 = pneg %p77
        %p179 = pneg %p106
        %p180 = pneg %p103
        %p181 = scmp.lt.s32.totalorder %s17, 1
        %s182 = scalar_select %p181, %s17, 1
        %s183 = smul.addr %s182, 27
        %s184 = smul.addr %s183, 4
        %s185 = scalar_lea.vmem %s3, %s184
        %p186 = scmp.lt.s32.totalorder %s17, 1
        %s187 = scalar_select %p186, %s17, 1
        %s188 = smul.addr %s187, 27
        %s189 = smul.addr %s188, 4
        %s190 = scalar_lea.vmem %s3, %s189
        %v192 = vld [vmem:[%s1] sm:$0xf]
        %v193 = vld [vmem:[%s1 + $0x4] sm:$0xf]
        %v194 = vld [vmem:[%s1 + $0x8] sm:$0xf]
        %v195 = vld [vmem:[%s1 + $0xc] sm:$0xf]
        %v196 = vld [vmem:[%s1 + $0x10] sm:$0xf]
        %v197 = vld [vmem:[%s1 + $0x14] sm:$0xf]
        %v198 = vld [vmem:[%s1 + $0x18] sm:$0xf]
        %v199 = vld [vmem:[%s1 + $0x1c] sm:$0xf]
        %v200 = vld [vmem:[%s1 + $0x20] sm:$0x7]
        %v201 = vld [vmem:[%s2] sm:$0xf]
        %v202 = vld [vmem:[%s2 + $0x4] sm:$0xf]
        %v203 = vld [vmem:[%s2 + $0x8] sm:$0xf]
        %v204 = vld [vmem:[%s2 + $0xc] sm:$0xf]
        %v205 = vld [vmem:[%s2 + $0x10] sm:$0xf]
        %v206 = vld [vmem:[%s2 + $0x14] sm:$0xf]
        %v207 = vld [vmem:[%s2 + $0x18] sm:$0xf]
        %v208 = vld [vmem:[%s2 + $0x1c] sm:$0xf]
        %v209 = vld [vmem:[%s163] sm:$0xff]
        %v210 = vld [vmem:[%s163 + $0x8] sm:$0xff]
        %v211 = vld [vmem:[%s163 + $0x10] sm:$0xff]
        %v212 = vld [vmem:[%s163 + $0x18] sm:$0xff]
        %v213 = vld [vmem:[%s163 + $0x20] sm:$0xff]
        %v214 = vld [vmem:[%s163 + $0x28] sm:$0xff]
        %v215 = vld [vmem:[%s163 + $0x30] sm:$0xff]
        %v216 = vld [vmem:[%s163 + $0x38] sm:$0xff]
        %v217 = vpack.c.bf16 %v210, %v209
        %v218 = vpack.c.bf16 %v212, %v211
        %v219 = vpack.c.bf16 %v214, %v213
        %v220 = vpack.c.bf16 %v216, %v215
        %v230 = vunpack.c.l.b16 %v192
        %v231 = vunpack.c.l.b16 %v193
        %v232 = vunpack.c.l.b16 %v194
        %v233 = vunpack.c.l.b16 %v195
        %v234 = vunpack.c.l.b16 %v196
        %v235 = vunpack.c.l.b16 %v197
        %v236 = vunpack.c.l.b16 %v198
        %v237 = vunpack.c.l.b16 %v199
        %v238 = vunpack.c.l.b16 %v200
        %v239 = vpack.c.b16 %v231, %v230
        %v240 = vpack.c.b16 %v233, %v232
        %v241 = vpack.c.b16 %v235, %v234
        %v242 = vpack.c.b16 %v237, %v236
        %v243 = vpack.c.b16 %v238, %v238
        %vm244 = vcmask 523264
        %v246 = vsel %vm244, %v239, 0
        %v249 = vsel %vm244, %v240, 0
        %v252 = vsel %vm244, %v241, 0
        %v255 = vsel %vm244, %v242, 0
        %v258 = vsel %vm244, %v243, 0
        %260 = vmatprep.subr.bf16.mxu0 0
        %261 = vmatpush1.bf16.msra.mxu0 %v217
        %262 = vmatprep.subr.bf16.mxu0 0
        %263 = vmatpush1.bf16.msra.mxu0 %v218
        %264 = vmatprep.subr.bf16.mxu0 0
        %265 = vmatpush1.bf16.msra.mxu0 %v219
        %266 = vmatprep.subr.bf16.mxu0 0
        %267 = vmatpush1.bf16.msra.mxu0 %v220
        %268 = vmatprep.subr.bf16.mxu0 0
        %269 = vmatpush1.bf16.msra.mxu0 0
        %270 = vmatprep.subr.bf16.mxu0 0
        %271 = vmatpush1.bf16.msra.mxu0 0
        %272 = vmatprep.subr.bf16.mxu0 0
        %273 = vmatpush1.bf16.msra.mxu0 0
        %274 = vmatprep.subr.bf16.mxu0 0
        %275 = vmatpush1.bf16.msra.mxu0 0
        %276 = vmatprep.subr.bf16.mxu0 0
        %277 = vmatpush1.bf16.msra.mxu0 0
        %278 = vmatprep.subr.bf16.mxu0 0
        %279 = vmatpush1.bf16.msra.mxu0 0
        %280 = vmatprep.subr.bf16.mxu0 0
        %281 = vmatpush1.bf16.msra.mxu0 0
        %282 = vmatprep.subr.bf16.mxu0 0
        %283 = vmatpush1.bf16.msra.mxu0 0
        %284 = vmatprep.subr.bf16.mxu0 0
        %285 = vmatpush1.bf16.msra.mxu0 0
        %286 = vmatprep.subr.bf16.mxu0 0
        %287 = vmatpush1.bf16.msra.mxu0 0
        %288 = vmatprep.subr.bf16.mxu0 0
        %289 = vmatpush1.bf16.msra.mxu0 0
        %290 = vmatprep.subr.bf16.mxu0 0
        %291 = vmatpush1.bf16.msra.mxu0 0
        %292 = vmatprep.mubr.bf16.mxu0 0
        %293 = vmatmul.mubr.bf16.gmra.mrb[0].mxu0 %v246
        %v294 = vpop.f32.mrb[0].mxu0
        %v295 = vadd.f32 0.0, %v294
        %v296 = vpop.f32.mrb[0].mxu0
        %v297 = vpop.f32.mrb[0].mxu0
        %v298 = vadd.f32 0.0, %v297
        %v299 = vpop.f32.mrb[0].mxu0
        %300 = vmatprep.mubr.bf16.mxu0 0
        %301 = vmatmul.mubr.bf16.gmra.mrb[0].mxu0 %v249
        %v302 = vpop.f32.mrb[0].mxu0
        %v303 = vadd.f32 0.0, %v302
        %v304 = vpop.f32.mrb[0].mxu0
        %v305 = vpop.f32.mrb[0].mxu0
        %v306 = vadd.f32 0.0, %v305
        %v307 = vpop.f32.mrb[0].mxu0
        %308 = vmatprep.mubr.bf16.mxu0 0
        %309 = vmatmul.mubr.bf16.gmra.mrb[0].mxu0 %v252
        %v310 = vpop.f32.mrb[0].mxu0
        %v311 = vadd.f32 0.0, %v310
        %v312 = vpop.f32.mrb[0].mxu0
        %v313 = vpop.f32.mrb[0].mxu0
        %v314 = vadd.f32 0.0, %v313
        %v315 = vpop.f32.mrb[0].mxu0
        %316 = vmatprep.mubr.bf16.mxu0 0
        %317 = vmatmul.mubr.bf16.gmra.mrb[0].mxu0 %v255
        %v318 = vpop.f32.mrb[0].mxu0
        %v319 = vadd.f32 0.0, %v318
        %v320 = vpop.f32.mrb[0].mxu0
        %v321 = vpop.f32.mrb[0].mxu0
        %v322 = vadd.f32 0.0, %v321
        %v323 = vpop.f32.mrb[0].mxu0
        %324 = vmatprep.mubr.bf16.mxu0 0
        %325 = vmatmul.mubr.bf16.gmra.mrb[0].mxu0 %v258
        %v326 = vpop.f32.mrb[0].mxu0
        %v327 = vadd.f32 0.0, %v326
        %v328 = vpop.f32.mrb[0].mxu0
        %v329 = vpop.f32.mrb[0].mxu0
        %v330 = vpop.f32.mrb[0].mxu0
        %331 = vdwg.mxu0
        %v332 = vpack.c.bf16 %v298, %v295
        %v333 = vpack.c.bf16 %v306, %v303
        %v334 = vpack.c.bf16 %v314, %v311
        %v335 = vpack.c.bf16 %v322, %v319
        %v336 = vpack.c.bf16 %v327, %v327
        %v345 = vunpack.c.l.b16 %v201
        %v346 = vunpack.c.l.b16 %v202
        %v347 = vunpack.c.l.b16 %v203
        %v348 = vunpack.c.l.b16 %v204
        %v349 = vunpack.c.l.b16 %v205
        %v350 = vunpack.c.l.b16 %v206
        %v351 = vunpack.c.l.b16 %v207
        %v352 = vunpack.c.l.b16 %v208
        %v353 = vpack.c.b16 %v346, %v345
        %v354 = vpack.c.b16 %v348, %v347
        %v355 = vpack.c.b16 %v350, %v349
        %v356 = vpack.c.b16 %v352, %v351
        %v362 = vsel %vm244, %v332, 0
        %v365 = vsel %vm244, %v333, 0
        %v368 = vsel %vm244, %v334, 0
        %v371 = vsel %vm244, %v335, 0
        %v374 = vsel %vm244, %v336, 0
        %376 = vmatprep.subr.bf16.mxu0 0
        %377 = vmatpush1.bf16.msra.mxu0 %v353
        %378 = vmatprep.subr.bf16.mxu0 0
        %379 = vmatpush1.bf16.msra.mxu0 %v354
        %380 = vmatprep.subr.bf16.mxu0 0
        %381 = vmatpush1.bf16.msra.mxu0 %v355
        %382 = vmatprep.subr.bf16.mxu0 0
        %383 = vmatpush1.bf16.msra.mxu0 %v356
        %384 = vmatprep.subr.bf16.mxu0 0
        %385 = vmatpush1.bf16.msra.mxu0 0
        %386 = vmatprep.subr.bf16.mxu0 0
        %387 = vmatpush1.bf16.msra.mxu0 0
        %388 = vmatprep.subr.bf16.mxu0 0
        %389 = vmatpush1.bf16.msra.mxu0 0
        %390 = vmatprep.subr.bf16.mxu0 0
        %391 = vmatpush1.bf16.msra.mxu0 0
        %392 = vmatprep.subr.bf16.mxu0 0
        %393 = vmatpush1.bf16.msra.mxu0 0
        %394 = vmatprep.subr.bf16.mxu0 0
        %395 = vmatpush1.bf16.msra.mxu0 0
        %396 = vmatprep.subr.bf16.mxu0 0
        %397 = vmatpush1.bf16.msra.mxu0 0
        %398 = vmatprep.subr.bf16.mxu0 0
        %399 = vmatpush1.bf16.msra.mxu0 0
        %400 = vmatprep.subr.bf16.mxu0 0
        %401 = vmatpush1.bf16.msra.mxu0 0
        %402 = vmatprep.subr.bf16.mxu0 0
        %403 = vmatpush1.bf16.msra.mxu0 0
        %404 = vmatprep.subr.bf16.mxu0 0
        %405 = vmatpush1.bf16.msra.mxu0 0
        %406 = vmatprep.subr.bf16.mxu0 0
        %407 = vmatpush1.bf16.msra.mxu0 0
        %408 = vmatprep.mubr.bf16.mxu0 0
        %409 = vmatmul.mubr.bf16.gmra.mrb[0].mxu0 %v362
        %v410 = vpop.f32.mrb[0].mxu0
        %v411 = vadd.f32 0.0, %v410
        %v412 = vpop.f32.mrb[0].mxu0
        %v413 = vpop.f32.mrb[0].mxu0
        %v414 = vadd.f32 0.0, %v413
        %v415 = vpop.f32.mrb[0].mxu0
        %416 = vmatprep.mubr.bf16.mxu0 0
        %417 = vmatmul.mubr.bf16.gmra.mrb[0].mxu0 %v365
        %v418 = vpop.f32.mrb[0].mxu0
        %v419 = vadd.f32 0.0, %v418
        %v420 = vpop.f32.mrb[0].mxu0
        %v421 = vpop.f32.mrb[0].mxu0
        %v422 = vadd.f32 0.0, %v421
        %v423 = vpop.f32.mrb[0].mxu0
        %424 = vmatprep.mubr.bf16.mxu0 0
        %425 = vmatmul.mubr.bf16.gmra.mrb[0].mxu0 %v368
        %v426 = vpop.f32.mrb[0].mxu0
        %v427 = vadd.f32 0.0, %v426
        %v428 = vpop.f32.mrb[0].mxu0
        %v429 = vpop.f32.mrb[0].mxu0
        %v430 = vadd.f32 0.0, %v429
        %v431 = vpop.f32.mrb[0].mxu0
        %432 = vmatprep.mubr.bf16.mxu0 0
        %433 = vmatmul.mubr.bf16.gmra.mrb[0].mxu0 %v371
        %v434 = vpop.f32.mrb[0].mxu0
        %v435 = vadd.f32 0.0, %v434
        %v436 = vpop.f32.mrb[0].mxu0
        %v437 = vpop.f32.mrb[0].mxu0
        %v438 = vadd.f32 0.0, %v437
        %v439 = vpop.f32.mrb[0].mxu0
        %440 = vmatprep.mubr.bf16.mxu0 0
        %441 = vmatmul.mubr.bf16.gmra.mrb[0].mxu0 %v374
        %v442 = vpop.f32.mrb[0].mxu0
        %v443 = vadd.f32 0.0, %v442
        %v444 = vpop.f32.mrb[0].mxu0
        %v445 = vpop.f32.mrb[0].mxu0
        %v446 = vpop.f32.mrb[0].mxu0
        %447 = vdwg.mxu0
        %v448 = vpack.c.bf16 %v414, %v411
        %v449 = vpack.c.bf16 %v422, %v419
        %v450 = vpack.c.bf16 %v430, %v427
        %v451 = vpack.c.bf16 %v438, %v435
        %v452 = vpack.c.bf16 %v443, %v443
        %v458 = vunpack.c.l.b16 %v448
        %v459 = vunpack.c.h.b16 %v448
        %v460 = vunpack.c.l.b16 %v449
        %v461 = vunpack.c.h.b16 %v449
        %v462 = vunpack.c.l.b16 %v450
        %v463 = vunpack.c.h.b16 %v450
        %v464 = vunpack.c.l.b16 %v451
        %v465 = vunpack.c.h.b16 %v451
        %v466 = vunpack.c.l.b16 %v452
        %v467 = vpack.c.b16 %v458, %v458
        %v468 = vpack.c.b16 %v459, %v459
        %v469 = vpack.c.b16 %v460, %v460
        %v470 = vpack.c.b16 %v461, %v461
        %v471 = vpack.c.b16 %v462, %v462
        %v472 = vpack.c.b16 %v463, %v463
        %v473 = vpack.c.b16 %v464, %v464
        %v474 = vpack.c.b16 %v465, %v465
        %v475 = vpack.c.b16 %v466, %v466
        %vm485 = vcmask 568320
        %486 = vst.msk [vmem:[%s190] sm:$0xf] %vm485, %v467
        %487 = vst.msk [vmem:[%s190 + $0x4] sm:$0xf] %vm485, %v468
        %488 = vst.msk [vmem:[%s190 + $0x8] sm:$0xf] %vm485, %v469
        %489 = vst.msk [vmem:[%s190 + $0xc] sm:$0xf] %vm485, %v470
        %490 = vst.msk [vmem:[%s190 + $0x10] sm:$0xf] %vm485, %v471
        %491 = vst.msk [vmem:[%s190 + $0x14] sm:$0xf] %vm485, %v472
        %492 = vst.msk [vmem:[%s190 + $0x18] sm:$0xf] %vm485, %v473
        %493 = vst.msk [vmem:[%s190 + $0x1c] sm:$0xf] %vm485, %v474
        %vm494 = vcmask 567296
        %495 = vst.msk [vmem:[%s190 + $0x20] sm:$0x7] %vm494, %v475
        %s496 = scalar_lea.vmem %s163, 64 [#allocation2]
        %v497 = vld [vmem:[%s496] sm:$0xff]
        %v498 = vld [vmem:[%s496 + $0x8] sm:$0xff]
        %v499 = vld [vmem:[%s496 + $0x10] sm:$0xff]
        %v500 = vld [vmem:[%s496 + $0x18] sm:$0xff]
        %v501 = vld [vmem:[%s496 + $0x20] sm:$0xff]
        %v502 = vld [vmem:[%s496 + $0x28] sm:$0xff]
        %v503 = vld [vmem:[%s496 + $0x30] sm:$0xff]
        %v504 = vld [vmem:[%s496 + $0x38] sm:$0xff]
        %v505 = vpack.c.bf16 %v498, %v497
        %v506 = vpack.c.bf16 %v500, %v499
        %v507 = vpack.c.bf16 %v502, %v501
        %v508 = vpack.c.bf16 %v504, %v503
        %509 = vmatprep.subr.bf16.mxu0 0
        %510 = vmatpush1.bf16.msra.mxu0 %v505
        %511 = vmatprep.subr.bf16.mxu0 0
        %512 = vmatpush1.bf16.msra.mxu0 %v506
        %513 = vmatprep.subr.bf16.mxu0 0
        %514 = vmatpush1.bf16.msra.mxu0 %v507
        %515 = vmatprep.subr.bf16.mxu0 0
        %516 = vmatpush1.bf16.msra.mxu0 %v508
        %517 = vmatprep.subr.bf16.mxu0 0
        %518 = vmatpush1.bf16.msra.mxu0 0
        %519 = vmatprep.subr.bf16.mxu0 0
        %520 = vmatpush1.bf16.msra.mxu0 0
        %521 = vmatprep.subr.bf16.mxu0 0
        %522 = vmatpush1.bf16.msra.mxu0 0
        %523 = vmatprep.subr.bf16.mxu0 0
        %524 = vmatpush1.bf16.msra.mxu0 0
        %525 = vmatprep.subr.bf16.mxu0 0
        %526 = vmatpush1.bf16.msra.mxu0 0
        %527 = vmatprep.subr.bf16.mxu0 0
        %528 = vmatpush1.bf16.msra.mxu0 0
        %529 = vmatprep.subr.bf16.mxu0 0
        %530 = vmatpush1.bf16.msra.mxu0 0
        %531 = vmatprep.subr.bf16.mxu0 0
        %532 = vmatpush1.bf16.msra.mxu0 0
        %533 = vmatprep.subr.bf16.mxu0 0
        %534 = vmatpush1.bf16.msra.mxu0 0
        %535 = vmatprep.subr.bf16.mxu0 0
        %536 = vmatpush1.bf16.msra.mxu0 0
        %537 = vmatprep.subr.bf16.mxu0 0
        %538 = vmatpush1.bf16.msra.mxu0 0
        %539 = vmatprep.subr.bf16.mxu0 0
        %540 = vmatpush1.bf16.msra.mxu0 0
        %541 = vmatprep.mubr.bf16.mxu0 0
        %542 = vmatmul.mubr.bf16.gmra.mrb[0].mxu0 %v246
        %v543 = vpop.f32.mrb[0].mxu0
        %v544 = vadd.f32 0.0, %v543
        %v545 = vpop.f32.mrb[0].mxu0
        %v546 = vpop.f32.mrb[0].mxu0
        %v547 = vadd.f32 0.0, %v546
        %v548 = vpop.f32.mrb[0].mxu0
        %549 = vmatprep.mubr.bf16.mxu0 0
        %550 = vmatmul.mubr.bf16.gmra.mrb[0].mxu0 %v249
        %v551 = vpop.f32.mrb[0].mxu0
        %v552 = vadd.f32 0.0, %v551
        %v553 = vpop.f32.mrb[0].mxu0
        %v554 = vpop.f32.mrb[0].mxu0
        %v555 = vadd.f32 0.0, %v554
        %v556 = vpop.f32.mrb[0].mxu0
        %557 = vmatprep.mubr.bf16.mxu0 0
        %558 = vmatmul.mubr.bf16.gmra.mrb[0].mxu0 %v252
        %v559 = vpop.f32.mrb[0].mxu0
        %v560 = vadd.f32 0.0, %v559
        %v561 = vpop.f32.mrb[0].mxu0
        %v562 = vpop.f32.mrb[0].mxu0
        %v563 = vadd.f32 0.0, %v562
        %v564 = vpop.f32.mrb[0].mxu0
        %565 = vmatprep.mubr.bf16.mxu0 0
        %566 = vmatmul.mubr.bf16.gmra.mrb[0].mxu0 %v255
        %v567 = vpop.f32.mrb[0].mxu0
        %v568 = vadd.f32 0.0, %v567
        %v569 = vpop.f32.mrb[0].mxu0
        %v570 = vpop.f32.mrb[0].mxu0
        %v571 = vadd.f32 0.0, %v570
        %v572 = vpop.f32.mrb[0].mxu0
        %573 = vmatprep.mubr.bf16.mxu0 0
        %574 = vmatmul.mubr.bf16.gmra.mrb[0].mxu0 %v258
        %v575 = vpop.f32.mrb[0].mxu0
        %v576 = vadd.f32 0.0, %v575
        %v577 = vpop.f32.mrb[0].mxu0
        %v578 = vpop.f32.mrb[0].mxu0
        %v579 = vpop.f32.mrb[0].mxu0
        %580 = vdwg.mxu0
        %v581 = vpack.c.bf16 %v547, %v544
        %v582 = vpack.c.bf16 %v555, %v552
        %v583 = vpack.c.bf16 %v563, %v560
        %v584 = vpack.c.bf16 %v571, %v568
        %v585 = vpack.c.bf16 %v576, %v576
        %v587 = vsel %vm244, %v581, 0
        %v590 = vsel %vm244, %v582, 0
        %v593 = vsel %vm244, %v583, 0
        %v596 = vsel %vm244, %v584, 0
        %v599 = vsel %vm244, %v585, 0
        %601 = vmatprep.subr.bf16.mxu0 0
        %602 = vmatpush1.bf16.msra.mxu0 %v353
        %603 = vmatprep.subr.bf16.mxu0 0
        %604 = vmatpush1.bf16.msra.mxu0 %v354
        %605 = vmatprep.subr.bf16.mxu0 0
        %606 = vmatpush1.bf16.msra.mxu0 %v355
        %607 = vmatprep.subr.bf16.mxu0 0
        %608 = vmatpush1.bf16.msra.mxu0 %v356
        %609 = vmatprep.subr.bf16.mxu0 0
        %610 = vmatpush1.bf16.msra.mxu0 0
        %611 = vmatprep.subr.bf16.mxu0 0
        %612 = vmatpush1.bf16.msra.mxu0 0
        %613 = vmatprep.subr.bf16.mxu0 0
        %614 = vmatpush1.bf16.msra.mxu0 0
        %615 = vmatprep.subr.bf16.mxu0 0
        %616 = vmatpush1.bf16.msra.mxu0 0
        %617 = vmatprep.subr.bf16.mxu0 0
        %618 = vmatpush1.bf16.msra.mxu0 0
        %619 = vmatprep.subr.bf16.mxu0 0
        %620 = vmatpush1.bf16.msra.mxu0 0
        %621 = vmatprep.subr.bf16.mxu0 0
        %622 = vmatpush1.bf16.msra.mxu0 0
        %623 = vmatprep.subr.bf16.mxu0 0
        %624 = vmatpush1.bf16.msra.mxu0 0
        %625 = vmatprep.subr.bf16.mxu0 0
        %626 = vmatpush1.bf16.msra.mxu0 0
        %627 = vmatprep.subr.bf16.mxu0 0
        %628 = vmatpush1.bf16.msra.mxu0 0
        %629 = vmatprep.subr.bf16.mxu0 0
        %630 = vmatpush1.bf16.msra.mxu0 0
        %631 = vmatprep.subr.bf16.mxu0 0
        %632 = vmatpush1.bf16.msra.mxu0 0
        %633 = vmatprep.mubr.bf16.mxu0 0
        %634 = vmatmul.mubr.bf16.gmra.mrb[0].mxu0 %v587
        %v635 = vpop.f32.mrb[0].mxu0
        %v636 = vadd.f32 0.0, %v635
        %v637 = vpop.f32.mrb[0].mxu0
        %v638 = vpop.f32.mrb[0].mxu0
        %v639 = vadd.f32 0.0, %v638
        %v640 = vpop.f32.mrb[0].mxu0
        %641 = vmatprep.mubr.bf16.mxu0 0
        %642 = vmatmul.mubr.bf16.gmra.mrb[0].mxu0 %v590
        %v643 = vpop.f32.mrb[0].mxu0
        %v644 = vadd.f32 0.0, %v643
        %v645 = vpop.f32.mrb[0].mxu0
        %v646 = vpop.f32.mrb[0].mxu0
        %v647 = vadd.f32 0.0, %v646
        %v648 = vpop.f32.mrb[0].mxu0
        %649 = vmatprep.mubr.bf16.mxu0 0
        %650 = vmatmul.mubr.bf16.gmra.mrb[0].mxu0 %v593
        %v651 = vpop.f32.mrb[0].mxu0
        %v652 = vadd.f32 0.0, %v651
        %v653 = vpop.f32.mrb[0].mxu0
        %v654 = vpop.f32.mrb[0].mxu0
        %v655 = vadd.f32 0.0, %v654
        %v656 = vpop.f32.mrb[0].mxu0
        %657 = vmatprep.mubr.bf16.mxu0 0
        %658 = vmatmul.mubr.bf16.gmra.mrb[0].mxu0 %v596
        %v659 = vpop.f32.mrb[0].mxu0
        %v660 = vadd.f32 0.0, %v659
        %v661 = vpop.f32.mrb[0].mxu0
        %v662 = vpop.f32.mrb[0].mxu0
        %v663 = vadd.f32 0.0, %v662
        %v664 = vpop.f32.mrb[0].mxu0
        %665 = vmatprep.mubr.bf16.mxu0 0
        %666 = vmatmul.mubr.bf16.gmra.mrb[0].mxu0 %v599
        %v667 = vpop.f32.mrb[0].mxu0
        %v668 = vadd.f32 0.0, %v667
        %v669 = vpop.f32.mrb[0].mxu0
        %v670 = vpop.f32.mrb[0].mxu0
        %v671 = vpop.f32.mrb[0].mxu0
        %672 = vdwg.mxu0
        %v673 = vpack.c.bf16 %v639, %v636
        %v674 = vpack.c.bf16 %v647, %v644
        %v675 = vpack.c.bf16 %v655, %v652
        %v676 = vpack.c.bf16 %v663, %v660
        %v677 = vpack.c.bf16 %v668, %v668
        %v683 = vunpack.c.l.b16 %v673
        %v684 = vunpack.c.h.b16 %v673
        %v685 = vunpack.c.l.b16 %v674
        %v686 = vunpack.c.h.b16 %v674
        %v687 = vunpack.c.l.b16 %v675
        %v688 = vunpack.c.h.b16 %v675
        %v689 = vunpack.c.l.b16 %v676
        %v690 = vunpack.c.h.b16 %v676
        %v691 = vunpack.c.l.b16 %v677
        %v692 = vpack.c.b16 %v683, %v683
        %v693 = vpack.c.b16 %v684, %v684
        %v694 = vpack.c.b16 %v685, %v685
        %v695 = vpack.c.b16 %v686, %v686
        %v696 = vpack.c.b16 %v687, %v687
        %v697 = vpack.c.b16 %v688, %v688
        %v698 = vpack.c.b16 %v689, %v689
        %v699 = vpack.c.b16 %v690, %v690
        %v700 = vpack.c.b16 %v691, %v691
        %s710 = scalar_lea.vmem %s190, 36
        %711 = vst.msk [vmem:[%s710] sm:$0xf] %vm485, %v692
        %712 = vst.msk [vmem:[%s710 + $0x4] sm:$0xf] %vm485, %v693
        %713 = vst.msk [vmem:[%s710 + $0x8] sm:$0xf] %vm485, %v694
        %714 = vst.msk [vmem:[%s710 + $0xc] sm:$0xf] %vm485, %v695
        %715 = vst.msk [vmem:[%s710 + $0x10] sm:$0xf] %vm485, %v696
        %716 = vst.msk [vmem:[%s710 + $0x14] sm:$0xf] %vm485, %v697
        %717 = vst.msk [vmem:[%s710 + $0x18] sm:$0xf] %vm485, %v698
        %718 = vst.msk [vmem:[%s710 + $0x1c] sm:$0xf] %vm485, %v699
        %719 = vst.msk [vmem:[%s710 + $0x20] sm:$0x7] %vm494, %v700
        %s720 = scalar_lea.vmem %s163, 128 [#allocation2]
        %v721 = vld [vmem:[%s720] sm:$0xff]
        %v722 = vld [vmem:[%s720 + $0x8] sm:$0xff]
        %v723 = vld [vmem:[%s720 + $0x10] sm:$0xff]
        %v724 = vld [vmem:[%s720 + $0x18] sm:$0xff]
        %v725 = vld [vmem:[%s720 + $0x20] sm:$0xff]
        %v726 = vld [vmem:[%s720 + $0x28] sm:$0xff]
        %v727 = vld [vmem:[%s720 + $0x30] sm:$0xff]
        %v728 = vld [vmem:[%s720 + $0x38] sm:$0xff]
        %v729 = vpack.c.bf16 %v722, %v721
        %v730 = vpack.c.bf16 %v724, %v723
        %v731 = vpack.c.bf16 %v726, %v725
        %v732 = vpack.c.bf16 %v728, %v727
        %733 = vmatprep.subr.bf16.mxu0 0
        %734 = vmatpush1.bf16.msra.mxu0 %v729
        %735 = vmatprep.subr.bf16.mxu0 0
        %736 = vmatpush1.bf16.msra.mxu0 %v730
        %737 = vmatprep.subr.bf16.mxu0 0
        %738 = vmatpush1.bf16.msra.mxu0 %v731
        %739 = vmatprep.subr.bf16.mxu0 0
        %740 = vmatpush1.bf16.msra.mxu0 %v732
        %741 = vmatprep.subr.bf16.mxu0 0
        %742 = vmatpush1.bf16.msra.mxu0 0
        %743 = vmatprep.subr.bf16.mxu0 0
        %744 = vmatpush1.bf16.msra.mxu0 0
        %745 = vmatprep.subr.bf16.mxu0 0
        %746 = vmatpush1.bf16.msra.mxu0 0
        %747 = vmatprep.subr.bf16.mxu0 0
        %748 = vmatpush1.bf16.msra.mxu0 0
        %749 = vmatprep.subr.bf16.mxu0 0
        %750 = vmatpush1.bf16.msra.mxu0 0
        %751 = vmatprep.subr.bf16.mxu0 0
        %752 = vmatpush1.bf16.msra.mxu0 0
        %753 = vmatprep.subr.bf16.mxu0 0
        %754 = vmatpush1.bf16.msra.mxu0 0
        %755 = vmatprep.subr.bf16.mxu0 0
        %756 = vmatpush1.bf16.msra.mxu0 0
        %757 = vmatprep.subr.bf16.mxu0 0
        %758 = vmatpush1.bf16.msra.mxu0 0
        %759 = vmatprep.subr.bf16.mxu0 0
        %760 = vmatpush1.bf16.msra.mxu0 0
        %761 = vmatprep.subr.bf16.mxu0 0
        %762 = vmatpush1.bf16.msra.mxu0 0
        %763 = vmatprep.subr.bf16.mxu0 0
        %764 = vmatpush1.bf16.msra.mxu0 0
        %765 = vmatprep.mubr.bf16.mxu0 0
        %766 = vmatmul.mubr.bf16.gmra.mrb[0].mxu0 %v246
        %v767 = vpop.f32.mrb[0].mxu0
        %v768 = vadd.f32 0.0, %v767
        %v769 = vpop.f32.mrb[0].mxu0
        %v770 = vpop.f32.mrb[0].mxu0
        %v771 = vadd.f32 0.0, %v770
        %v772 = vpop.f32.mrb[0].mxu0
        %773 = vmatprep.mubr.bf16.mxu0 0
        %774 = vmatmul.mubr.bf16.gmra.mrb[0].mxu0 %v249
        %v775 = vpop.f32.mrb[0].mxu0
        %v776 = vadd.f32 0.0, %v775
        %v777 = vpop.f32.mrb[0].mxu0
        %v778 = vpop.f32.mrb[0].mxu0
        %v779 = vadd.f32 0.0, %v778
        %v780 = vpop.f32.mrb[0].mxu0
        %781 = vmatprep.mubr.bf16.mxu0 0
        %782 = vmatmul.mubr.bf16.gmra.mrb[0].mxu0 %v252
        %v783 = vpop.f32.mrb[0].mxu0
        %v784 = vadd.f32 0.0, %v783
        %v785 = vpop.f32.mrb[0].mxu0
        %v786 = vpop.f32.mrb[0].mxu0
        %v787 = vadd.f32 0.0, %v786
        %v788 = vpop.f32.mrb[0].mxu0
        %789 = vmatprep.mubr.bf16.mxu0 0
        %790 = vmatmul.mubr.bf16.gmra.mrb[0].mxu0 %v255
        %v791 = vpop.f32.mrb[0].mxu0
        %v792 = vadd.f32 0.0, %v791
        %v793 = vpop.f32.mrb[0].mxu0
        %v794 = vpop.f32.mrb[0].mxu0
        %v795 = vadd.f32 0.0, %v794
        %v796 = vpop.f32.mrb[0].mxu0
        %797 = vmatprep.mubr.bf16.mxu0 0
        %798 = vmatmul.mubr.bf16.gmra.mrb[0].mxu0 %v258
        %v799 = vpop.f32.mrb[0].mxu0
        %v800 = vadd.f32 0.0, %v799
        %v801 = vpop.f32.mrb[0].mxu0
        %v802 = vpop.f32.mrb[0].mxu0
        %v803 = vpop.f32.mrb[0].mxu0
        %804 = vdwg.mxu0
        %v805 = vpack.c.bf16 %v771, %v768
        %v806 = vpack.c.bf16 %v779, %v776
        %v807 = vpack.c.bf16 %v787, %v784
        %v808 = vpack.c.bf16 %v795, %v792
        %v809 = vpack.c.bf16 %v800, %v800
        %v811 = vsel %vm244, %v805, 0
        %v814 = vsel %vm244, %v806, 0
        %v817 = vsel %vm244, %v807, 0
        %v820 = vsel %vm244, %v808, 0
        %v823 = vsel %vm244, %v809, 0
        %825 = vmatprep.subr.bf16.mxu0 0
        %826 = vmatpush1.bf16.msra.mxu0 %v353
        %827 = vmatprep.subr.bf16.mxu0 0
        %828 = vmatpush1.bf16.msra.mxu0 %v354
        %829 = vmatprep.subr.bf16.mxu0 0
        %830 = vmatpush1.bf16.msra.mxu0 %v355
        %831 = vmatprep.subr.bf16.mxu0 0
        %832 = vmatpush1.bf16.msra.mxu0 %v356
        %833 = vmatprep.subr.bf16.mxu0 0
        %834 = vmatpush1.bf16.msra.mxu0 0
        %835 = vmatprep.subr.bf16.mxu0 0
        %836 = vmatpush1.bf16.msra.mxu0 0
        %837 = vmatprep.subr.bf16.mxu0 0
        %838 = vmatpush1.bf16.msra.mxu0 0
        %839 = vmatprep.subr.bf16.mxu0 0
        %840 = vmatpush1.bf16.msra.mxu0 0
        %841 = vmatprep.subr.bf16.mxu0 0
        %842 = vmatpush1.bf16.msra.mxu0 0
        %843 = vmatprep.subr.bf16.mxu0 0
        %844 = vmatpush1.bf16.msra.mxu0 0
        %845 = vmatprep.subr.bf16.mxu0 0
        %846 = vmatpush1.bf16.msra.mxu0 0
        %847 = vmatprep.subr.bf16.mxu0 0
        %848 = vmatpush1.bf16.msra.mxu0 0
        %849 = vmatprep.subr.bf16.mxu0 0
        %850 = vmatpush1.bf16.msra.mxu0 0
        %851 = vmatprep.subr.bf16.mxu0 0
        %852 = vmatpush1.bf16.msra.mxu0 0
        %853 = vmatprep.subr.bf16.mxu0 0
        %854 = vmatpush1.bf16.msra.mxu0 0
        %855 = vmatprep.subr.bf16.mxu0 0
        %856 = vmatpush1.bf16.msra.mxu0 0
        %857 = vmatprep.mubr.bf16.mxu0 0
        %858 = vmatmul.mubr.bf16.gmra.mrb[0].mxu0 %v811
        %v859 = vpop.f32.mrb[0].mxu0
        %v860 = vadd.f32 0.0, %v859
        %v861 = vpop.f32.mrb[0].mxu0
        %v862 = vpop.f32.mrb[0].mxu0
        %v863 = vadd.f32 0.0, %v862
        %v864 = vpop.f32.mrb[0].mxu0
        %865 = vmatprep.mubr.bf16.mxu0 0
        %866 = vmatmul.mubr.bf16.gmra.mrb[0].mxu0 %v814
        %v867 = vpop.f32.mrb[0].mxu0
        %v868 = vadd.f32 0.0, %v867
        %v869 = vpop.f32.mrb[0].mxu0
        %v870 = vpop.f32.mrb[0].mxu0
        %v871 = vadd.f32 0.0, %v870
        %v872 = vpop.f32.mrb[0].mxu0
        %873 = vmatprep.mubr.bf16.mxu0 0
        %874 = vmatmul.mubr.bf16.gmra.mrb[0].mxu0 %v817
        %v875 = vpop.f32.mrb[0].mxu0
        %v876 = vadd.f32 0.0, %v875
        %v877 = vpop.f32.mrb[0].mxu0
        %v878 = vpop.f32.mrb[0].mxu0
        %v879 = vadd.f32 0.0, %v878
        %v880 = vpop.f32.mrb[0].mxu0
        %881 = vmatprep.mubr.bf16.mxu0 0
        %882 = vmatmul.mubr.bf16.gmra.mrb[0].mxu0 %v820
        %v883 = vpop.f32.mrb[0].mxu0
        %v884 = vadd.f32 0.0, %v883
        %v885 = vpop.f32.mrb[0].mxu0
        %v886 = vpop.f32.mrb[0].mxu0
        %v887 = vadd.f32 0.0, %v886
        %v888 = vpop.f32.mrb[0].mxu0
        %889 = vmatprep.mubr.bf16.mxu0 0
        %890 = vmatmul.mubr.bf16.gmra.mrb[0].mxu0 %v823
        %v891 = vpop.f32.mrb[0].mxu0
        %v892 = vadd.f32 0.0, %v891
        %v893 = vpop.f32.mrb[0].mxu0
        %v894 = vpop.f32.mrb[0].mxu0
        %v895 = vpop.f32.mrb[0].mxu0
        %896 = vdwg.mxu0
        %v897 = vpack.c.bf16 %v863, %v860
        %v898 = vpack.c.bf16 %v871, %v868
        %v899 = vpack.c.bf16 %v879, %v876
        %v900 = vpack.c.bf16 %v887, %v884
        %v901 = vpack.c.bf16 %v892, %v892
        %v907 = vunpack.c.l.b16 %v897
        %v908 = vunpack.c.h.b16 %v897
        %v909 = vunpack.c.l.b16 %v898
        %v910 = vunpack.c.h.b16 %v898
        %v911 = vunpack.c.l.b16 %v899
        %v912 = vunpack.c.h.b16 %v899
        %v913 = vunpack.c.l.b16 %v900
        %v914 = vunpack.c.h.b16 %v900
        %v915 = vunpack.c.l.b16 %v901
        %v916 = vpack.c.b16 %v907, %v907
        %v917 = vpack.c.b16 %v908, %v908
        %v918 = vpack.c.b16 %v909, %v909
        %v919 = vpack.c.b16 %v910, %v910
        %v920 = vpack.c.b16 %v911, %v911
        %v921 = vpack.c.b16 %v912, %v912
        %v922 = vpack.c.b16 %v913, %v913
        %v923 = vpack.c.b16 %v914, %v914
        %v924 = vpack.c.b16 %v915, %v915
        %s934 = scalar_lea.vmem %s190, 72
        %935 = vst.msk [vmem:[%s934] sm:$0xf] %vm485, %v916
        %936 = vst.msk [vmem:[%s934 + $0x4] sm:$0xf] %vm485, %v917
        %937 = vst.msk [vmem:[%s934 + $0x8] sm:$0xf] %vm485, %v918
        %938 = vst.msk [vmem:[%s934 + $0xc] sm:$0xf] %vm485, %v919
        %939 = vst.msk [vmem:[%s934 + $0x10] sm:$0xf] %vm485, %v920
        %940 = vst.msk [vmem:[%s934 + $0x14] sm:$0xf] %vm485, %v921
        %941 = vst.msk [vmem:[%s934 + $0x18] sm:$0xf] %vm485, %v922
        %942 = vst.msk [vmem:[%s934 + $0x1c] sm:$0xf] %vm485, %v923
        %943 = vst.msk [vmem:[%s934 + $0x20] sm:$0x7] %vm494, %v924
        %p944 = scmp.lt.s32.totalorder %s17, 1
        %s945 = scalar_select %p944, %s17, 1
        %s946 = smul.addr %s945, 27
        %s947 = smul.addr %s946, 4
        %s948 = scalar_lea.vmem %s3, %s947
        // Predicated region
        $region37: #{tpu_custom_call.1} parent=31 // pred_check
          %p949 = pneg %p103
        $region38: #{tpu_custom_call.1} parent=31 // pred_check_branch
          %951 = sbr.rel (%p949) target = $region40
        $region39: #{tpu_custom_call.1} parent=31 // pred_region
          _
        $region40: #{tpu_custom_call.1} parent=31 // pred_fallthru
          _
      $region32: #{tpu_custom_call.1} parent=5 // pred_fallthru
        _
      %p952 = scmp.le.s32.totalorder 2, %s12
      // Predicated region
      $region41: #{tpu_custom_call.1} parent=5 // pred_check
        %p953 = pneg %p952
      $region42: #{tpu_custom_call.1} parent=5 // pred_check_branch
        %955 = sbr.rel (%p953) target = $region44
      $region43: #{tpu_custom_call.1} parent=5 // pred_region
        %s956 = ssub.s32 %s12, 2
        // Predicated region
        $region45: #{tpu_custom_call.1} parent=43 // pred_check
          %p957 = pneg %p109
        $region46: #{tpu_custom_call.1} parent=43 // pred_check_branch
          %959 = sbr.rel (%p957) target = $region48
        $region47: #{tpu_custom_call.1} parent=43 // pred_region
          %p960 = scmp.lt.s32.totalorder %s18, 1
          %s961 = scalar_select %p960, %s18, 1
          %s962 = smul.addr %s961, 27
          %s963 = smul.addr %s962, 4
          %s964 = scalar_lea.vmem %s3, %s963
        $region48: #{tpu_custom_call.1} parent=43 // pred_fallthru
          _
      $region44: #{tpu_custom_call.1} parent=5 // pred_fallthru
        _
    $region6: #{tpu_custom_call.1} parent=1 // loop_footer
      %s16 = sadd.s32 1, %s12
    $region7: #{tpu_custom_call.1} parent=1 // loop_footer_branch
      %11 = sbr.rel target = $region3
    $region8: #{tpu_custom_call.1} parent=1 // loop_exit
      _
    %965 = vsyncpa [#allocation3], 1
    %s966 = scalar_lea.sflag [#allocation3], 1
    %967 = vsyncpa %s966, 1

</llo_original>
